<compile_context>
chip_gen: v5e
topology: v5e:2x2
jax: 0.10.0
libtpu: 0.0.40
codegen_flags: <defaults>
</compile_context>

<pallas_src>
import functools

import jax
import jax.numpy as jnp
import numpy as np
from jax.experimental import pallas as pl
from jax.experimental.pallas import tpu as pltpu


def _round_up(x, m):
    return ((x + m - 1) // m) * m


def _ceil_div(a, b):
    return -(-a // b)


def poi_embedding_kernel(inv_l, idx_ref, expand_ref, colid_ref, tab_ref, out_ref):
    # idx_ref:    (TMP, pack*L)  int32  raw per-(slot, level) indices
    # expand_ref: (pack*L, K)    f32    0/1 matrix replicating each index over
    #                                   its (slot, level) row band
    # colid_ref:  (1, K)         f32    local row id per one-hot column (-1 on pads)
    # tab_ref:    (K, pack*Dp)   f32    block-diagonal concatenated table
    # out_ref:    (TMP, pack*Dp) f32    lane-dense packed output rows
    idx = idx_ref[...].astype(jnp.float32)
    # one tiny MXU matmul replaces pack*L per-column compare/cast/add passes;
    # exact for integer indices < 2^24 thanks to precision=HIGHEST
    expanded = jnp.dot(idx, expand_ref[...],
                       precision=jax.lax.Precision.HIGHEST,
                       preferred_element_type=jnp.float32)
    onehot = (expanded == colid_ref[...]).astype(jnp.float32)
    # fused lookup + level-sum + token packing on the MXU (f32 kept exact)
    out = jnp.dot(onehot, tab_ref[...],
                  precision=jax.lax.Precision.HIGHEST,
                  preferred_element_type=jnp.float32)
    # 1/L applied once here -> matches PyTorch's sum-then-divide order
    out_ref[...] = out * inv_l


def init_tables(key, layer_count_list, embedding_dim):
    """Row-concatenated embedding tables: (r_tot, D) f32 with each level's
    padding_idx row zeroed. N(0,1) init matches nn.Embedding's default init."""
    L = len(layer_count_list)
    keys = jax.random.split(key, L)
    parts = []
    for k, lc in zip(keys, layer_count_list):
        w = jax.random.normal(k, (lc + 1, embedding_dim), jnp.float32)
        w = w.at[lc].set(0.0)                       # padding_idx row -> zeros
        parts.append(w)
    return jnp.concatenate(parts, axis=0)


def _build_constants(layer_count_list, r8, pack):
    """Tiny host-side constants: expansion matrix G (pack*L, K) and per-column
    local row ids colid (1, K). Level offsets and slot shifts are folded in,
    so no per-token index arithmetic is needed anywhere."""
    L = len(layer_count_list)
    counts = [lc + 1 for lc in layer_count_list]
    offsets = np.cumsum([0] + counts[:-1]).astype(np.int64)
    K = pack * r8
    G = np.zeros((pack * L, K), np.float32)
    colid = np.full((1, K), -1.0, np.float32)       # -1 on pad columns: never matches
    for s in range(pack):
        for l, (cnt, off) in enumerate(zip(counts, offsets)):
            k0 = s * r8 + int(off)
            G[s * L + l, k0:k0 + cnt] = 1.0
            colid[0, k0:k0 + cnt] = np.arange(cnt, dtype=np.float32)
    return jnp.asarray(G), jnp.asarray(colid)


def poi_embedding(poi_path, table, layer_count_list, *, tm=4096):
    """poi_path: (B, S, L) int; table: (r_tot, D) f32 concatenated per-level
    tables (padding rows already zero). Returns (B, S, D) f32 mean of lookups."""
    B, S, L = poi_path.shape
    assert L == len(layer_count_list)
    r_tot, D = table.shape
    assert r_tot == sum(lc + 1 for lc in layer_count_list)
    N = B * S
    r8 = _round_up(r_tot, 8)

    # lane-dense output: pack tokens per 128-wide row, or zero-pad D to a 128 multiple
    if D < 128 and 128 % D == 0:
        pack, Dp = 128 // D, D
    else:
        pack, Dp = 1, _round_up(D, 128)
    # VMEM guard: the block-diagonal table scales as pack^2 (matters first on
    # v7x's 64 MiB VMEM); fall back to pack=1 for huge concatenated tables.
    if pack > 1 and (pack * r8) * (pack * D) * 4 > 4 * 1024 * 1024:
        pack, Dp = 1, _round_up(D, 128)
    K = pack * r8

    # token tile: large (review: 2048-4096) to amortize per-grid-step overhead,
    # multiple of 8*pack, clamped for tiny N
    tile_unit = 8 * pack
    tm = max(tile_unit, min(_round_up(tm, tile_unit), _round_up(N, tile_unit)))
    n_tiles = _ceil_div(N, tm)
    if n_tiles > 1 and n_tiles % 2:
        # v7x megacore balance: even number of REAL tiles by shrinking the tile
        # (no junk tile appended); harmless on single-TC v5e/v6e.
        tm_even = _round_up(_ceil_div(N, n_tiles + 1), tile_unit)
        if _ceil_div(N, tm_even) % 2 == 0:
            tm = tm_even
            n_tiles = _ceil_div(N, tm)
    n_pad = n_tiles * tm

    # only XLA work on the big index tensor: a free reshape + one small pad
    idx = poi_path.reshape(N, L).astype(jnp.int32)
    idx = jnp.pad(idx, ((0, n_pad - N), (0, 0)))    # pad tokens -> garbage rows, sliced off
    idx_packed = idx.reshape(n_pad // pack, pack * L)

    # tiny host-side constants (no per-token XLA passes)
    G, colid = _build_constants(layer_count_list, r8, pack)

    # block-diagonal packed table: each slot's outputs live in a disjoint lane band
    base = jnp.pad(table.astype(jnp.float32), ((0, r8 - r_tot), (0, Dp - D)))
    if pack == 1:
        tab_packed = base
    else:
        tab_packed = jnp.zeros((K, pack * Dp), jnp.float32)
        for s in range(pack):
            tab_packed = tab_packed.at[s * r8:(s + 1) * r8,
                                       s * Dp:(s + 1) * Dp].set(base)

    tmp_rows = tm // pack                            # packed rows per tile
    kernel = functools.partial(poi_embedding_kernel, 1.0 / L)
    out = pl.pallas_call(
        kernel,
        out_shape=jax.ShapeDtypeStruct((n_pad // pack, pack * Dp), jnp.float32),
        grid_spec=pltpu.PrefetchScalarGridSpec(
            num_scalar_prefetch=0,
            grid=(n_tiles,),
            in_specs=[
                pl.BlockSpec((tmp_rows, pack * L), lambda i: (i, 0)),
                # grid-invariant blocks: block index never changes -> DMA'd once
                # per core and kept resident for the whole grid
                pl.BlockSpec((pack * L, K), lambda i: (0, 0)),
                pl.BlockSpec((1, K), lambda i: (0, 0)),
                pl.BlockSpec((K, pack * Dp), lambda i: (0, 0)),
            ],
            out_specs=pl.BlockSpec((tmp_rows, pack * Dp), lambda i: (i, 0)),
        ),
        compiler_params=pltpu.CompilerParams(
            dimension_semantics=("parallel",),
            vmem_limit_bytes=32 * 1024 * 1024),      # headroom over v5e's 16 MiB default
    )(idx_packed, G, colid, tab_packed)

    out = out.reshape(n_pad, Dp)[:N, :D]
    return out.reshape(B, S, D)


if __name__ == "__main__":
    key = jax.random.PRNGKey(0)
    layer_count_list = [5, 7, 9]        # -> L = 3 embedding tables
    embedding_dim = 32
    B, S = 2, 8
    L = len(layer_count_list)

    k_tab, k_idx = jax.random.split(key)
    table = init_tables(k_tab, layer_count_list, embedding_dim)

    # indices per level in [0, layer_count] (layer_count == padding index)
    idx_keys = jax.random.split(k_idx, L)
    cols = [jax.random.randint(k, (B, S, 1), 0, lc + 1, jnp.int32)
            for k, lc in zip(idx_keys, layer_count_list)]
    poi_path = jnp.concatenate(cols, axis=-1)        # (B, S, L) int32

    out = jax.block_until_ready(
        poi_embedding(poi_path, table, layer_count_list))

    # pure-JAX reference with identical semantics to the PyTorch forward
    offsets = np.cumsum([0] + [lc + 1 for lc in layer_count_list[:-1]])
    ref = jnp.zeros((B, S, embedding_dim), jnp.float32)
    for l, off in enumerate(offsets):
        ref = ref + jnp.take(table, poi_path[..., l] + int(off), axis=0)
    ref = ref / L

    np.testing.assert_allclose(np.asarray(out), np.asarray(ref),
                               rtol=1e-5, atol=1e-5)
    print("KERNEL_OK")
</pallas_src>

<mosaic_0001>
module attributes {stable_mosaic.version = 11 : i64} {
  func.func @poi_embedding_kernel(%arg0: i32, %arg1: memref<8x12xi32, #tpu.memory_space<vmem>>, %arg2: memref<12x96xf32, #tpu.memory_space<vmem>>, %arg3: memref<1x96xf32, #tpu.memory_space<vmem>>, %arg4: memref<96x128xf32, #tpu.memory_space<vmem>>, %arg5: memref<8x128xf32, #tpu.memory_space<vmem>>) attributes {dimension_semantics = [#tpu.dimension_semantics<parallel>], iteration_bounds = array<i64: 1>, scalar_prefetch = 0 : i64, scratch_operands = 0 : i64, tpu.core_type = #tpu.core_type<tc>, window_params = [{transform_indices = @transform_0, window_bounds = array<i64: 8, 12>}, {pipeline_mode = #tpu.pipeline_mode<synchronous>, transform_indices = @transform_1, window_bounds = array<i64: 12, 96>}, {pipeline_mode = #tpu.pipeline_mode<synchronous>, transform_indices = @transform_2, window_bounds = array<i64: 1, 96>}, {pipeline_mode = #tpu.pipeline_mode<synchronous>, transform_indices = @transform_3, window_bounds = array<i64: 96, 128>}, {transform_indices = @transform_4, window_bounds = array<i64: 8, 128>}]} {
    %c0 = arith.constant 0 : index
    %c0_0 = arith.constant 0 : index
    %0 = vector.load %arg1[%c0, %c0_0] : memref<8x12xi32, #tpu.memory_space<vmem>>, vector<8x12xi32>
    %1 = arith.sitofp %0 : vector<8x12xi32> to vector<8x12xf32>
    %c0_1 = arith.constant 0 : index
    %c0_2 = arith.constant 0 : index
    %2 = vector.load %arg2[%c0_1, %c0_2] : memref<12x96xf32, #tpu.memory_space<vmem>>, vector<12x96xf32>
    %cst = arith.constant dense<0.000000e+00> : vector<8x96xf32>
    %3 = tpu.matmul %1, %2, %cst {dimension_numbers = #tpu.dot_dimension_numbers<[1], [0], [0], [1], [0, 0, 1, 1], [], []>, precision = #tpu.contract_precision<fp32>} : vector<8x12xf32>, vector<12x96xf32>, vector<8x96xf32> -> vector<8x96xf32>
    %c0_3 = arith.constant 0 : index
    %c0_4 = arith.constant 0 : index
    %4 = vector.load %arg3[%c0_3, %c0_4] : memref<1x96xf32, #tpu.memory_space<vmem>>, vector<1x96xf32>
    %5 = vector.broadcast %4 : vector<1x96xf32> to vector<8x96xf32>
    %6 = arith.cmpf oeq, %3, %5 : vector<8x96xf32>
    %7 = arith.extui %6 : vector<8x96xi1> to vector<8x96xi32>
    %8 = arith.sitofp %7 : vector<8x96xi32> to vector<8x96xf32>
    %c0_5 = arith.constant 0 : index
    %c0_6 = arith.constant 0 : index
    %9 = vector.load %arg4[%c0_5, %c0_6] : memref<96x128xf32, #tpu.memory_space<vmem>>, vector<96x128xf32>
    %cst_7 = arith.constant dense<0.000000e+00> : vector<8x128xf32>
    %10 = tpu.matmul %8, %9, %cst_7 {dimension_numbers = #tpu.dot_dimension_numbers<[1], [0], [0], [1], [0, 0, 1, 1], [], []>, precision = #tpu.contract_precision<fp32>} : vector<8x96xf32>, vector<96x128xf32>, vector<8x128xf32> -> vector<8x128xf32>
    %cst_8 = arith.constant 0.333333343 : f32
    %11 = vector.broadcast %cst_8 : f32 to vector<8x128xf32>
    %12 = arith.mulf %10, %11 : vector<8x128xf32>
    %c0_9 = arith.constant 0 : index
    %c0_10 = arith.constant 0 : index
    %13 = vector.load %arg5[%c0_9, %c0_10] : memref<8x128xf32, #tpu.memory_space<vmem>>, vector<8x128xf32>
    tpu.vector_store %arg5[%c0_9, %c0_10], %12 {strides = array<i32>} : memref<8x128xf32, #tpu.memory_space<vmem>>, vector<8x128xf32>,
    return
  }
  func.func @transform_0(%arg0: i32) -> (i32, i32) {
    %c0_i32 = arith.constant 0 : i32
    %c0_i32_0 = arith.constant 0 : i32
    return %arg0, %c0_i32 : i32, i32
  }
  func.func @transform_1(%arg0: i32) -> (i32, i32) {
    %c0_i32 = arith.constant 0 : i32
    %c0_i32_0 = arith.constant 0 : i32
    %c0_i32_1 = arith.constant 0 : i32
    return %c0_i32, %c0_i32_0 : i32, i32
  }
  func.func @transform_2(%arg0: i32) -> (i32, i32) {
    %c0_i32 = arith.constant 0 : i32
    %c0_i32_0 = arith.constant 0 : i32
    %c0_i32_1 = arith.constant 0 : i32
    return %c0_i32, %c0_i32_0 : i32, i32
  }
  func.func @transform_3(%arg0: i32) -> (i32, i32) {
    %c0_i32 = arith.constant 0 : i32
    %c0_i32_0 = arith.constant 0 : i32
    %c0_i32_1 = arith.constant 0 : i32
    return %c0_i32, %c0_i32_0 : i32, i32
  }
  func.func @transform_4(%arg0: i32) -> (i32, i32) {
    %c0_i32 = arith.constant 0 : i32
    %c0_i32_0 = arith.constant 0 : i32
    return %arg0, %c0_i32 : i32, i32
  }
}

</mosaic_0001>

<llo_original>
// kernel: tpu_custom_call.1
$region0: #{tpu_custom_call.1}
  #allocation0 [shape = 'u32[]', space=smem, size = 0x4, offset = 0x4, fixed_abs, tag = 'smem constant byte address 0x4 - core index']
  #allocation1 [shape = 'u32[72,128]{1,0:T(1,128)}', space=vmem, size = 0x9000, scoped, tag = 'internal scratch']
  %s0 = inlined_call_operand.hbm [shape: s32[8,12], index: 0, kind: input, shape index: {}]
  %s1 = inlined_call_operand.hbm [shape: f32[12,96], index: 1, kind: input, shape index: {}]
  %s2 = inlined_call_operand.vmem [shape: f32[1,96], index: 2, kind: input, shape index: {}]
  %s3 = inlined_call_operand.hbm [shape: f32[96,128], index: 3, kind: input, shape index: {}]
  %s4 = inlined_call_operand.hbm [shape: f32[8,128], index: 4, kind: output, shape index: {}]
  %s5 = sld [smem:[#allocation0]]
  $region38: #{tpu_custom_call.1} parent=0
    _
  %s7 = ssub.s32 1, %s5
  %s8 = scalar_select 0, %s7, %s5
  $region1: #{tpu_custom_call.1} parent=0
    #allocation2 [shape = 'u8[4096]{0}', space=vmem, size = 0x1000, scoped, tag = 'input window, operand 0, single buffered']
    #allocation3 [shape = 's32[1]{0}', space=sflag, size = 0x4, scoped, tag = 'scoped memory for tpu_custom_call.1']
    #allocation4 [shape = 's32[1]{0}', space=sflag, size = 0x4, scoped, tag = 'scoped memory for tpu_custom_call.1']
    #allocation5 [shape = 'u8[8192]{0}', space=vmem, size = 0x2000, scoped, tag = 'input window, operand 1, single buffered']
    #allocation6 [shape = 's32[1]{0}', space=sflag, size = 0x4, scoped, tag = 'scoped memory for tpu_custom_call.1']
    #allocation7 [shape = 'u8[49152]{0}', space=vmem, size = 0xc000, scoped, tag = 'input window, operand 3, single buffered']
    #allocation8 [shape = 'u8[4096]{0}', space=vmem, size = 0x1000, scoped, tag = 'output window, operand 0, single buffered']
    %9 = vsyncpa [#allocation3], 0
    %10 = vsyncpa [#allocation6], 0
    %11 = vsyncpa [#allocation4], 0
    // Predicated region
    $region2: #{tpu_custom_call.1} parent=1 // pred_check
      _
    $region3: #{tpu_custom_call.1} parent=1 // pred_check_branch
      %13 = sbr.rel (0) target = $region5
    $region4: #{tpu_custom_call.1} parent=1 // pred_region
      %15 = vsyncadd [#allocation3], 0
      %s17 = sshll.u32 %s0, 4
      %s18 = int_to_ptr.hbm [resolvable:$true] %s17
      %s19 = sshll.u32 [#allocation2], 4
      %s20 = int_to_ptr.vmem [resolvable:$true] %s19
      %22 = dma.hbm_to_vmem [thread:$0]  %s18, 128, %s20, [#allocation3]
    $region5: #{tpu_custom_call.1} parent=1 // pred_fallthru
      _
    // Predicated region
    $region6: #{tpu_custom_call.1} parent=1 // pred_check
      _
    $region7: #{tpu_custom_call.1} parent=1 // pred_check_branch
      %24 = sbr.rel (0) target = $region9
    $region8: #{tpu_custom_call.1} parent=1 // pred_region
      %26 = vsyncadd [#allocation6], 0
      %s27 = sshll.u32 %s1, 4
      %s28 = int_to_ptr.hbm [resolvable:$true] %s27
      %s29 = sshll.u32 [#allocation5], 4
      %s30 = int_to_ptr.vmem [resolvable:$true] %s29
      %35 = dma.hbm_to_vmem [thread:$0]  %s28, 256, %s30, [#allocation6], 128, 128, 8
    $region9: #{tpu_custom_call.1} parent=1 // pred_fallthru
      _
    // Predicated region
    $region10: #{tpu_custom_call.1} parent=1 // pred_check
      _
    $region11: #{tpu_custom_call.1} parent=1 // pred_check_branch
      %37 = sbr.rel (0) target = $region13
    $region12: #{tpu_custom_call.1} parent=1 // pred_region
      _
    $region13: #{tpu_custom_call.1} parent=1 // pred_fallthru
      _
    // Predicated region
    $region14: #{tpu_custom_call.1} parent=1 // pred_check
      _
    $region15: #{tpu_custom_call.1} parent=1 // pred_check_branch
      %39 = sbr.rel (0) target = $region17
    $region16: #{tpu_custom_call.1} parent=1 // pred_region
      %41 = vsyncadd [#allocation6], 0
      %s42 = sshll.u32 %s3, 4
      %s43 = int_to_ptr.hbm [resolvable:$true] %s42
      %s44 = sshll.u32 [#allocation7], 4
      %s45 = int_to_ptr.vmem [resolvable:$true] %s44
      %50 = dma.hbm_to_vmem [thread:$0]  %s43, 1536, %s45, [#allocation6], 128, 128, 8
    $region17: #{tpu_custom_call.1} parent=1 // pred_fallthru
      _
    // Predicated region
    $region18: #{tpu_custom_call.1} parent=1 // pred_check
      _
    $region19: #{tpu_custom_call.1} parent=1 // pred_check_branch
      %52 = sbr.rel (0) target = $region21
    $region20: #{tpu_custom_call.1} parent=1 // pred_region
      %54 = dma.done [#allocation3], 128
    $region21: #{tpu_custom_call.1} parent=1 // pred_fallthru
      _
    // Predicated region
    $region22: #{tpu_custom_call.1} parent=1 // pred_check
      _
    $region23: #{tpu_custom_call.1} parent=1 // pred_check_branch
      %56 = sbr.rel (0) target = $region25
    $region24: #{tpu_custom_call.1} parent=1 // pred_region
      %58 = dma.done [#allocation6], 256
    $region25: #{tpu_custom_call.1} parent=1 // pred_fallthru
      _
    // Predicated region
    $region26: #{tpu_custom_call.1} parent=1 // pred_check
      _
    $region27: #{tpu_custom_call.1} parent=1 // pred_check_branch
      %60 = sbr.rel (0) target = $region29
    $region28: #{tpu_custom_call.1} parent=1 // pred_region
      %62 = dma.done [#allocation6], 1536
    $region29: #{tpu_custom_call.1} parent=1 // pred_fallthru
      _
    %v63 = vld [vmem:[#allocation2] sm:$0xff]
    %v64 = vcvt.s32.f32 %v63
    %v65 = vld [vmem:[#allocation5] sm:$0xff]
    %v66 = vld [vmem:[#allocation5 + $0x8] sm:$0xf]
    %vm67 = vcmask 97280
    %v69 = vsel %vm67, %v64, 0
    %vm71 = vcmask 1043456
    %v73 = vsel %vm71, %v66, 0
    %75 = vmatpush.msra.mxu0 0.0
    %76 = vmatpush.msra.mxu0 0.0
    %77 = vmatpush.msra.mxu0 0.0
    %78 = vmatpush.msra.mxu0 0.0
    %79 = vmatpush.msra.mxu0 0.0
    %80 = vmatpush.msra.mxu0 0.0
    %81 = vmatpush.msra.mxu0 0.0
    %82 = vmatpush.msra.mxu0 0.0
    %83 = vmatpush.msra.mxu0 0.0
    %84 = vmatpush.msra.mxu0 0.0
    %85 = vmatpush.msra.mxu0 0.0
    %86 = vmatpush.msra.mxu0 0.0
    %87 = vmatpush.msra.mxu0 0.0
    %88 = vmatpush.msra.mxu0 0.0
    %v89 = vand.u32 %v73, 4294901760
    %90 = vmatpush.msra.mxu0 %v89
    %v91 = vand.u32 %v65, 4294901760
    %92 = vmatpush.msra.mxu0 %v91
    %v93 = vand.u32 %v69, 4294901760
    %v94 = vsub.f32 %v69, %v93
    %v95 = vand.u32 %v94, 4294901760
    %v96 = vsub.f32 %v94, %v95
    %v97 = vand.u32 %v96, 4294901760
    %98 = vmatmul.f32.gmra.mxu0 %v97
    %v99 = vpop.f32.mrf.mxu0
    %v100 = vadd.f32 0.0, %v99
    %101 = vdwg.mxu0
    %102 = vmatpush.msra.mxu0 0.0
    %103 = vmatpush.msra.mxu0 0.0
    %104 = vmatpush.msra.mxu0 0.0
    %105 = vmatpush.msra.mxu0 0.0
    %106 = vmatpush.msra.mxu0 0.0
    %107 = vmatpush.msra.mxu0 0.0
    %108 = vmatpush.msra.mxu0 0.0
    %109 = vmatpush.msra.mxu0 0.0
    %110 = vmatpush.msra.mxu0 0.0
    %111 = vmatpush.msra.mxu0 0.0
    %112 = vmatpush.msra.mxu0 0.0
    %113 = vmatpush.msra.mxu0 0.0
    %114 = vmatpush.msra.mxu0 0.0
    %115 = vmatpush.msra.mxu0 0.0
    %v116 = vand.u32 %v73, 4294901760
    %v117 = vsub.f32 %v73, %v116
    %v118 = vand.u32 %v117, 4294901760
    %v119 = vsub.f32 %v117, %v118
    %v120 = vand.u32 %v119, 4294901760
    %121 = vmatpush.msra.mxu0 %v120
    %v122 = vand.u32 %v65, 4294901760
    %v123 = vsub.f32 %v65, %v122
    %v124 = vand.u32 %v123, 4294901760
    %v125 = vsub.f32 %v123, %v124
    %v126 = vand.u32 %v125, 4294901760
    %127 = vmatpush.msra.mxu0 %v126
    %v128 = vand.u32 %v69, 4294901760
    %129 = vmatmul.f32.gmra.mxu0 %v128
    %v130 = vpop.f32.mrf.mxu0
    %v131 = vadd.f32 %v100, %v130
    %132 = vdwg.mxu0
    %133 = vmatpush.msra.mxu0 0.0
    %134 = vmatpush.msra.mxu0 0.0
    %135 = vmatpush.msra.mxu0 0.0
    %136 = vmatpush.msra.mxu0 0.0
    %137 = vmatpush.msra.mxu0 0.0
    %138 = vmatpush.msra.mxu0 0.0
    %139 = vmatpush.msra.mxu0 0.0
    %140 = vmatpush.msra.mxu0 0.0
    %141 = vmatpush.msra.mxu0 0.0
    %142 = vmatpush.msra.mxu0 0.0
    %143 = vmatpush.msra.mxu0 0.0
    %144 = vmatpush.msra.mxu0 0.0
    %145 = vmatpush.msra.mxu0 0.0
    %146 = vmatpush.msra.mxu0 0.0
    %v147 = vand.u32 %v73, 4294901760
    %v148 = vsub.f32 %v73, %v147
    %149 = vmatpush.msra.mxu0 %v148
    %v150 = vand.u32 %v65, 4294901760
    %v151 = vsub.f32 %v65, %v150
    %152 = vmatpush.msra.mxu0 %v151
    %v153 = vand.u32 %v69, 4294901760
    %v154 = vsub.f32 %v69, %v153
    %155 = vmatmul.f32.gmra.mxu0 %v154
    %v156 = vpop.f32.mrf.mxu0
    %v157 = vadd.f32 %v131, %v156
    %158 = vdwg.mxu0
    %159 = vmatpush.msra.mxu0 0.0
    %160 = vmatpush.msra.mxu0 0.0
    %161 = vmatpush.msra.mxu0 0.0
    %162 = vmatpush.msra.mxu0 0.0
    %163 = vmatpush.msra.mxu0 0.0
    %164 = vmatpush.msra.mxu0 0.0
    %165 = vmatpush.msra.mxu0 0.0
    %166 = vmatpush.msra.mxu0 0.0
    %167 = vmatpush.msra.mxu0 0.0
    %168 = vmatpush.msra.mxu0 0.0
    %169 = vmatpush.msra.mxu0 0.0
    %170 = vmatpush.msra.mxu0 0.0
    %171 = vmatpush.msra.mxu0 0.0
    %172 = vmatpush.msra.mxu0 0.0
    %v173 = vand.u32 %v73, 4294901760
    %174 = vmatpush.msra.mxu0 %v173
    %v175 = vand.u32 %v65, 4294901760
    %176 = vmatpush.msra.mxu0 %v175
    %v177 = vand.u32 %v69, 4294901760
    %v178 = vsub.f32 %v69, %v177
    %v179 = vand.u32 %v178, 4294901760
    %180 = vmatmul.f32.gmra.mxu0 %v179
    %v181 = vpop.f32.mrf.mxu0
    %v182 = vadd.f32 %v157, %v181
    %183 = vdwg.mxu0
    %184 = vmatpush.msra.mxu0 0.0
    %185 = vmatpush.msra.mxu0 0.0
    %186 = vmatpush.msra.mxu0 0.0
    %187 = vmatpush.msra.mxu0 0.0
    %188 = vmatpush.msra.mxu0 0.0
    %189 = vmatpush.msra.mxu0 0.0
    %190 = vmatpush.msra.mxu0 0.0
    %191 = vmatpush.msra.mxu0 0.0
    %192 = vmatpush.msra.mxu0 0.0
    %193 = vmatpush.msra.mxu0 0.0
    %194 = vmatpush.msra.mxu0 0.0
    %195 = vmatpush.msra.mxu0 0.0
    %196 = vmatpush.msra.mxu0 0.0
    %197 = vmatpush.msra.mxu0 0.0
    %v198 = vand.u32 %v73, 4294901760
    %v199 = vsub.f32 %v73, %v198
    %v200 = vand.u32 %v199, 4294901760
    %201 = vmatpush.msra.mxu0 %v200
    %v202 = vand.u32 %v65, 4294901760
    %v203 = vsub.f32 %v65, %v202
    %v204 = vand.u32 %v203, 4294901760
    %205 = vmatpush.msra.mxu0 %v204
    %v206 = vand.u32 %v69, 4294901760
    %207 = vmatmul.f32.gmra.mxu0 %v206
    %v208 = vpop.f32.mrf.mxu0
    %v209 = vadd.f32 %v182, %v208
    %210 = vdwg.mxu0
    %211 = vmatpush.msra.mxu0 0.0
    %212 = vmatpush.msra.mxu0 0.0
    %213 = vmatpush.msra.mxu0 0.0
    %214 = vmatpush.msra.mxu0 0.0
    %215 = vmatpush.msra.mxu0 0.0
    %216 = vmatpush.msra.mxu0 0.0
    %217 = vmatpush.msra.mxu0 0.0
    %218 = vmatpush.msra.mxu0 0.0
    %219 = vmatpush.msra.mxu0 0.0
    %220 = vmatpush.msra.mxu0 0.0
    %221 = vmatpush.msra.mxu0 0.0
    %222 = vmatpush.msra.mxu0 0.0
    %223 = vmatpush.msra.mxu0 0.0
    %224 = vmatpush.msra.mxu0 0.0
    %v225 = vand.u32 %v73, 4294901760
    %226 = vmatpush.msra.mxu0 %v225
    %v227 = vand.u32 %v65, 4294901760
    %228 = vmatpush.msra.mxu0 %v227
    %v229 = vand.u32 %v69, 4294901760
    %230 = vmatmul.f32.gmra.mxu0 %v229
    %v231 = vpop.f32.mrf.mxu0
    %v232 = vadd.f32 %v209, %v231
    %233 = vdwg.mxu0
    %v234 = vld [vmem:[%s2] sm:$0x1]
    %v236 = vperm.slane %v234, 0
    %vm238 = vcmp.eq.f32.partialorder %v232, %v236
    %v239 = vsel %vm238, 1, 0
    %v240 = vcvt.s32.f32 %v239
    %v241 = vld [vmem:[#allocation7] sm:$0xff]
    %v242 = vld [vmem:[#allocation7 + $0x8] sm:$0xff]
    %v243 = vld [vmem:[#allocation7 + $0x10] sm:$0xff]
    %v244 = vld [vmem:[#allocation7 + $0x18] sm:$0xff]
    %v245 = vld [vmem:[#allocation7 + $0x20] sm:$0xff]
    %v246 = vld [vmem:[#allocation7 + $0x28] sm:$0xff]
    %v247 = vld [vmem:[#allocation7 + $0x30] sm:$0xff]
    %v248 = vld [vmem:[#allocation7 + $0x38] sm:$0xff]
    %v249 = vld [vmem:[#allocation7 + $0x40] sm:$0xff]
    %v250 = vld [vmem:[#allocation7 + $0x48] sm:$0xff]
    %v251 = vld [vmem:[#allocation7 + $0x50] sm:$0xff]
    %v252 = vld [vmem:[#allocation7 + $0x58] sm:$0xff]
    %vm253 = vcmask 785408
    %v255 = vsel %vm253, %v240, 0
    %257 = vmatpush.msra.mxu0 0.0
    %258 = vmatpush.msra.mxu0 0.0
    %259 = vmatpush.msra.mxu0 0.0
    %260 = vmatpush.msra.mxu0 0.0
    %v261 = vand.u32 %v252, 4294901760
    %262 = vmatpush.msra.mxu0 %v261
    %v263 = vand.u32 %v251, 4294901760
    %264 = vmatpush.msra.mxu0 %v263
    %v265 = vand.u32 %v250, 4294901760
    %266 = vmatpush.msra.mxu0 %v265
    %v267 = vand.u32 %v249, 4294901760
    %268 = vmatpush.msra.mxu0 %v267
    %v269 = vand.u32 %v248, 4294901760
    %270 = vmatpush.msra.mxu0 %v269
    %v271 = vand.u32 %v247, 4294901760
    %272 = vmatpush.msra.mxu0 %v271
    %v273 = vand.u32 %v246, 4294901760
    %274 = vmatpush.msra.mxu0 %v273
    %v275 = vand.u32 %v245, 4294901760
    %276 = vmatpush.msra.mxu0 %v275
    %v277 = vand.u32 %v244, 4294901760
    %278 = vmatpush.msra.mxu0 %v277
    %v279 = vand.u32 %v243, 4294901760
    %280 = vmatpush.msra.mxu0 %v279
    %v281 = vand.u32 %v242, 4294901760
    %282 = vmatpush.msra.mxu0 %v281
    %v283 = vand.u32 %v241, 4294901760
    %284 = vmatpush.msra.mxu0 %v283
    %v285 = vand.u32 %v255, 4294901760
    %v286 = vsub.f32 %v255, %v285
    %v287 = vand.u32 %v286, 4294901760
    %v288 = vsub.f32 %v286, %v287
    %v289 = vand.u32 %v288, 4294901760
    %290 = vmatmul.f32.gmra.mxu0 %v289
    %v291 = vpop.f32.mrf.mxu0
    %v292 = vadd.f32 0.0, %v291
    %293 = vdwg.mxu0
    %294 = vmatpush.msra.mxu0 0.0
    %295 = vmatpush.msra.mxu0 0.0
    %296 = vmatpush.msra.mxu0 0.0
    %297 = vmatpush.msra.mxu0 0.0
    %v298 = vand.u32 %v252, 4294901760
    %v299 = vsub.f32 %v252, %v298
    %v300 = vand.u32 %v299, 4294901760
    %v301 = vsub.f32 %v299, %v300
    %v302 = vand.u32 %v301, 4294901760
    %303 = vmatpush.msra.mxu0 %v302
    %v304 = vand.u32 %v251, 4294901760
    %v305 = vsub.f32 %v251, %v304
    %v306 = vand.u32 %v305, 4294901760
    %v307 = vsub.f32 %v305, %v306
    %v308 = vand.u32 %v307, 4294901760
    %309 = vmatpush.msra.mxu0 %v308
    %v310 = vand.u32 %v250, 4294901760
    %v311 = vsub.f32 %v250, %v310
    %v312 = vand.u32 %v311, 4294901760
    %v313 = vsub.f32 %v311, %v312
    %v314 = vand.u32 %v313, 4294901760
    %315 = vmatpush.msra.mxu0 %v314
    %v316 = vand.u32 %v249, 4294901760
    %v317 = vsub.f32 %v249, %v316
    %v318 = vand.u32 %v317, 4294901760
    %v319 = vsub.f32 %v317, %v318
    %v320 = vand.u32 %v319, 4294901760
    %321 = vmatpush.msra.mxu0 %v320
    %v322 = vand.u32 %v248, 4294901760
    %v323 = vsub.f32 %v248, %v322
    %v324 = vand.u32 %v323, 4294901760
    %v325 = vsub.f32 %v323, %v324
    %v326 = vand.u32 %v325, 4294901760
    %327 = vmatpush.msra.mxu0 %v326
    %v328 = vand.u32 %v247, 4294901760
    %v329 = vsub.f32 %v247, %v328
    %v330 = vand.u32 %v329, 4294901760
    %v331 = vsub.f32 %v329, %v330
    %v332 = vand.u32 %v331, 4294901760
    %333 = vmatpush.msra.mxu0 %v332
    %v334 = vand.u32 %v246, 4294901760
    %v335 = vsub.f32 %v246, %v334
    %v336 = vand.u32 %v335, 4294901760
    %v337 = vsub.f32 %v335, %v336
    %v338 = vand.u32 %v337, 4294901760
    %339 = vmatpush.msra.mxu0 %v338
    %v340 = vand.u32 %v245, 4294901760
    %v341 = vsub.f32 %v245, %v340
    %v342 = vand.u32 %v341, 4294901760
    %v343 = vsub.f32 %v341, %v342
    %v344 = vand.u32 %v343, 4294901760
    %345 = vmatpush.msra.mxu0 %v344
    %v346 = vand.u32 %v244, 4294901760
    %v347 = vsub.f32 %v244, %v346
    %v348 = vand.u32 %v347, 4294901760
    %v349 = vsub.f32 %v347, %v348
    %v350 = vand.u32 %v349, 4294901760
    %351 = vmatpush.msra.mxu0 %v350
    %v352 = vand.u32 %v243, 4294901760
    %v353 = vsub.f32 %v243, %v352
    %v354 = vand.u32 %v353, 4294901760
    %v355 = vsub.f32 %v353, %v354
    %v356 = vand.u32 %v355, 4294901760
    %357 = vmatpush.msra.mxu0 %v356
    %v358 = vand.u32 %v242, 4294901760
    %v359 = vsub.f32 %v242, %v358
    %v360 = vand.u32 %v359, 4294901760
    %v361 = vsub.f32 %v359, %v360
    %v362 = vand.u32 %v361, 4294901760
    %363 = vmatpush.msra.mxu0 %v362
    %v364 = vand.u32 %v241, 4294901760
    %v365 = vsub.f32 %v241, %v364
    %v366 = vand.u32 %v365, 4294901760
    %v367 = vsub.f32 %v365, %v366
    %v368 = vand.u32 %v367, 4294901760
    %369 = vmatpush.msra.mxu0 %v368
    %v370 = vand.u32 %v255, 4294901760
    %371 = vmatmul.f32.gmra.mxu0 %v370
    %v372 = vpop.f32.mrf.mxu0
    %v373 = vadd.f32 %v292, %v372
    %374 = vdwg.mxu0
    %375 = vmatpush.msra.mxu0 0.0
    %376 = vmatpush.msra.mxu0 0.0
    %377 = vmatpush.msra.mxu0 0.0
    %378 = vmatpush.msra.mxu0 0.0
    %v379 = vand.u32 %v252, 4294901760
    %v380 = vsub.f32 %v252, %v379
    %381 = vmatpush.msra.mxu0 %v380
    %v382 = vand.u32 %v251, 4294901760
    %v383 = vsub.f32 %v251, %v382
    %384 = vmatpush.msra.mxu0 %v383
    %v385 = vand.u32 %v250, 4294901760
    %v386 = vsub.f32 %v250, %v385
    %387 = vmatpush.msra.mxu0 %v386
    %v388 = vand.u32 %v249, 4294901760
    %v389 = vsub.f32 %v249, %v388
    %390 = vmatpush.msra.mxu0 %v389
    %v391 = vand.u32 %v248, 4294901760
    %v392 = vsub.f32 %v248, %v391
    %393 = vmatpush.msra.mxu0 %v392
    %v394 = vand.u32 %v247, 4294901760
    %v395 = vsub.f32 %v247, %v394
    %396 = vmatpush.msra.mxu0 %v395
    %v397 = vand.u32 %v246, 4294901760
    %v398 = vsub.f32 %v246, %v397
    %399 = vmatpush.msra.mxu0 %v398
    %v400 = vand.u32 %v245, 4294901760
    %v401 = vsub.f32 %v245, %v400
    %402 = vmatpush.msra.mxu0 %v401
    %v403 = vand.u32 %v244, 4294901760
    %v404 = vsub.f32 %v244, %v403
    %405 = vmatpush.msra.mxu0 %v404
    %v406 = vand.u32 %v243, 4294901760
    %v407 = vsub.f32 %v243, %v406
    %408 = vmatpush.msra.mxu0 %v407
    %v409 = vand.u32 %v242, 4294901760
    %v410 = vsub.f32 %v242, %v409
    %411 = vmatpush.msra.mxu0 %v410
    %v412 = vand.u32 %v241, 4294901760
    %v413 = vsub.f32 %v241, %v412
    %414 = vmatpush.msra.mxu0 %v413
    %v415 = vand.u32 %v255, 4294901760
    %v416 = vsub.f32 %v255, %v415
    %417 = vmatmul.f32.gmra.mxu0 %v416
    %v418 = vpop.f32.mrf.mxu0
    %v419 = vadd.f32 %v373, %v418
    %420 = vdwg.mxu0
    %421 = vmatpush.msra.mxu0 0.0
    %422 = vmatpush.msra.mxu0 0.0
    %423 = vmatpush.msra.mxu0 0.0
    %424 = vmatpush.msra.mxu0 0.0
    %v425 = vand.u32 %v252, 4294901760
    %426 = vmatpush.msra.mxu0 %v425
    %v427 = vand.u32 %v251, 4294901760
    %428 = vmatpush.msra.mxu0 %v427
    %v429 = vand.u32 %v250, 4294901760
    %430 = vmatpush.msra.mxu0 %v429
    %v431 = vand.u32 %v249, 4294901760
    %432 = vmatpush.msra.mxu0 %v431
    %v433 = vand.u32 %v248, 4294901760
    %434 = vmatpush.msra.mxu0 %v433
    %v435 = vand.u32 %v247, 4294901760
    %436 = vmatpush.msra.mxu0 %v435
    %v437 = vand.u32 %v246, 4294901760
    %438 = vmatpush.msra.mxu0 %v437
    %v439 = vand.u32 %v245, 4294901760
    %440 = vmatpush.msra.mxu0 %v439
    %v441 = vand.u32 %v244, 4294901760
    %442 = vmatpush.msra.mxu0 %v441
    %v443 = vand.u32 %v243, 4294901760
    %444 = vmatpush.msra.mxu0 %v443
    %v445 = vand.u32 %v242, 4294901760
    %446 = vmatpush.msra.mxu0 %v445
    %v447 = vand.u32 %v241, 4294901760
    %448 = vmatpush.msra.mxu0 %v447
    %v449 = vand.u32 %v255, 4294901760
    %v450 = vsub.f32 %v255, %v449
    %v451 = vand.u32 %v450, 4294901760
    %452 = vmatmul.f32.gmra.mxu0 %v451
    %v453 = vpop.f32.mrf.mxu0
    %v454 = vadd.f32 %v419, %v453
    %455 = vdwg.mxu0
    %456 = vmatpush.msra.mxu0 0.0
    %457 = vmatpush.msra.mxu0 0.0
    %458 = vmatpush.msra.mxu0 0.0
    %459 = vmatpush.msra.mxu0 0.0
    %v460 = vand.u32 %v252, 4294901760
    %v461 = vsub.f32 %v252, %v460
    %v462 = vand.u32 %v461, 4294901760
    %463 = vmatpush.msra.mxu0 %v462
    %v464 = vand.u32 %v251, 4294901760
    %v465 = vsub.f32 %v251, %v464
    %v466 = vand.u32 %v465, 4294901760
    %467 = vmatpush.msra.mxu0 %v466
    %v468 = vand.u32 %v250, 4294901760
    %v469 = vsub.f32 %v250, %v468
    %v470 = vand.u32 %v469, 4294901760
    %471 = vmatpush.msra.mxu0 %v470
    %v472 = vand.u32 %v249, 4294901760
    %v473 = vsub.f32 %v249, %v472
    %v474 = vand.u32 %v473, 4294901760
    %475 = vmatpush.msra.mxu0 %v474
    %v476 = vand.u32 %v248, 4294901760
    %v477 = vsub.f32 %v248, %v476
    %v478 = vand.u32 %v477, 4294901760
    %479 = vmatpush.msra.mxu0 %v478
    %v480 = vand.u32 %v247, 4294901760
    %v481 = vsub.f32 %v247, %v480
    %v482 = vand.u32 %v481, 4294901760
    %483 = vmatpush.msra.mxu0 %v482
    %v484 = vand.u32 %v246, 4294901760
    %v485 = vsub.f32 %v246, %v484
    %v486 = vand.u32 %v485, 4294901760
    %487 = vmatpush.msra.mxu0 %v486
    %v488 = vand.u32 %v245, 4294901760
    %v489 = vsub.f32 %v245, %v488
    %v490 = vand.u32 %v489, 4294901760
    %491 = vmatpush.msra.mxu0 %v490
    %v492 = vand.u32 %v244, 4294901760
    %v493 = vsub.f32 %v244, %v492
    %v494 = vand.u32 %v493, 4294901760
    %495 = vmatpush.msra.mxu0 %v494
    %v496 = vand.u32 %v243, 4294901760
    %v497 = vsub.f32 %v243, %v496
    %v498 = vand.u32 %v497, 4294901760
    %499 = vmatpush.msra.mxu0 %v498
    %v500 = vand.u32 %v242, 4294901760
    %v501 = vsub.f32 %v242, %v500
    %v502 = vand.u32 %v501, 4294901760
    %503 = vmatpush.msra.mxu0 %v502
    %v504 = vand.u32 %v241, 4294901760
    %v505 = vsub.f32 %v241, %v504
    %v506 = vand.u32 %v505, 4294901760
    %507 = vmatpush.msra.mxu0 %v506
    %v508 = vand.u32 %v255, 4294901760
    %509 = vmatmul.f32.gmra.mxu0 %v508
    %v510 = vpop.f32.mrf.mxu0
    %v511 = vadd.f32 %v454, %v510
    %512 = vdwg.mxu0
    %513 = vmatpush.msra.mxu0 0.0
    %514 = vmatpush.msra.mxu0 0.0
    %515 = vmatpush.msra.mxu0 0.0
    %516 = vmatpush.msra.mxu0 0.0
    %v517 = vand.u32 %v252, 4294901760
    %518 = vmatpush.msra.mxu0 %v517
    %v519 = vand.u32 %v251, 4294901760
    %520 = vmatpush.msra.mxu0 %v519
    %v521 = vand.u32 %v250, 4294901760
    %522 = vmatpush.msra.mxu0 %v521
    %v523 = vand.u32 %v249, 4294901760
    %524 = vmatpush.msra.mxu0 %v523
    %v525 = vand.u32 %v248, 4294901760
    %526 = vmatpush.msra.mxu0 %v525
    %v527 = vand.u32 %v247, 4294901760
    %528 = vmatpush.msra.mxu0 %v527
    %v529 = vand.u32 %v246, 4294901760
    %530 = vmatpush.msra.mxu0 %v529
    %v531 = vand.u32 %v245, 4294901760
    %532 = vmatpush.msra.mxu0 %v531
    %v533 = vand.u32 %v244, 4294901760
    %534 = vmatpush.msra.mxu0 %v533
    %v535 = vand.u32 %v243, 4294901760
    %536 = vmatpush.msra.mxu0 %v535
    %v537 = vand.u32 %v242, 4294901760
    %538 = vmatpush.msra.mxu0 %v537
    %v539 = vand.u32 %v241, 4294901760
    %540 = vmatpush.msra.mxu0 %v539
    %v541 = vand.u32 %v255, 4294901760
    %542 = vmatmul.f32.gmra.mxu0 %v541
    %v543 = vpop.f32.mrf.mxu0
    %v544 = vadd.f32 %v511, %v543
    %545 = vdwg.mxu0
    %v546 = vmul.f32 %v544, 0.33333334
    %547 = vst [vmem:[#allocation8] sm:$0xff] %v546
    // Predicated region
    $region30: #{tpu_custom_call.1} parent=1 // pred_check
      _
    $region31: #{tpu_custom_call.1} parent=1 // pred_check_branch
      %549 = sbr.rel (0) target = $region33
    $region32: #{tpu_custom_call.1} parent=1 // pred_region
      %551 = vsyncadd [#allocation4], 0
      %s553 = sshll.u32 [#allocation8], 4
      %s554 = int_to_ptr.vmem [resolvable:$true] %s553
      %s555 = sshll.u32 %s4, 4
      %s556 = int_to_ptr.hbm [resolvable:$true] %s555
      %558 = dma.vmem_to_hbm [thread:$0]  %s554, 128, %s556, [#allocation4]
    $region33: #{tpu_custom_call.1} parent=1 // pred_fallthru
      _
    // Predicated region
    $region34: #{tpu_custom_call.1} parent=1 // pred_check
      _
    $region35: #{tpu_custom_call.1} parent=1 // pred_check_branch
      %560 = sbr.rel (0) target = $region37
    $region36: #{tpu_custom_call.1} parent=1 // pred_region
      %562 = dma.done [#allocation4], 128
    $region37: #{tpu_custom_call.1} parent=1 // pred_fallthru
      _
    %563 = vsyncpa [#allocation3], 1
    %564 = vsyncpa [#allocation6], 1
    %565 = vsyncpa [#allocation4], 1

</llo_original>
